<compile_context>
chip_gen: v5e
topology: v5e:2x2
jax: 0.10.0
libtpu: 0.0.40
codegen_flags: <defaults>
</compile_context>

<pallas_src>
import jax
import jax.numpy as jnp
from jax import lax
from jax.experimental import pallas as pl
from jax.experimental.pallas import tpu as pltpu


def _make_mlp_kernel(num_hidden):
    """Fused MLP kernel for `num_hidden` (Linear+ReLU) layers followed by Linear(.,1)+Sigmoid.

    Ref layout (all VMEM):
      refs[0]               : x tile, batch-major     (bm, n_feat)   f32 (cast in-kernel)
      refs[1+2l], refs[2+2l]: W_l (out_l, in_l), b_l (out_l, 1)      W in compute dtype, b f32
      refs[-3], refs[-2]    : w_out (h_last, 1), b_out (1, 1)        f32
      refs[-1]              : output row              (1, bm)        lane-dense
    """

    def kernel(*refs):
        x_ref = refs[0]
        o_ref = refs[-1]
        wb = refs[1:-1]

        # First layer consumes the batch-major x tile directly: contract the feature axes of
        # W0 (out0, n_feat) and x (bm, n_feat) -> (out0, bm).  The small in-VMEM transpose this
        # implies (XLU) is far cheaper than a wrapper-side HBM transpose of x.
        w0 = wb[0][...]
        b0 = wb[1][...]
        h = lax.dot_general(
            w0, x_ref[...].astype(w0.dtype),
            dimension_numbers=(((1,), (1,)), ((), ())),
            preferred_element_type=jnp.float32,
        ) + b0
        h = jnp.maximum(h, 0.0)

        # Remaining hidden layers: feature-major (features on sublanes, batch on lanes).
        for l in range(1, num_hidden):
            w = wb[2 * l][...]
            b = wb[2 * l + 1][...]
            h = jnp.dot(w, h.astype(w.dtype), preferred_element_type=jnp.float32) + b
            h = jnp.maximum(h, 0.0)

        # Final Linear(h_last, 1): a 1-column matmul wastes a full MXU pass, so do it as a
        # VPU multiply + sublane (XLU) reduction -> lane-dense (1, bm) row.
        w_out = wb[-2][...]          # (h_last, 1) f32
        b_out = wb[-1][...]          # (1, 1)      f32
        z = jnp.sum(h * w_out, axis=0, keepdims=True) + b_out   # (1, bm)

        # Numerically stable sigmoid (EUP tanh), avoids exp(-z) -> inf for large -z.
        o_ref[...] = (0.5 * (jnp.tanh(0.5 * z) + 1.0)).astype(o_ref.dtype)

    return kernel


def _pick_bm(batch, bm):
    """Pick the batch tile.  Default 512 (safe on v5e/v6e/v7x; sweep up to 2048 on v6e/v7x for
    huge B).  For small B, shrink so the grid has >= 2 steps and both v7x TensorCores get work."""
    if bm is None:
        bm = 512
    assert bm % 128 == 0, "bm must be a multiple of 128 (lane-dense tiles and stores)"
    two_way = pl.cdiv(pl.cdiv(batch, 2), 128) * 128   # tile giving a 2-step grid, lane-aligned
    return max(128, min(bm, two_way))


def simple_nn_regressor_forward(x, params, *, bm=None, compute_dtype=jnp.float32):
    """Forward pass of simpleNNRegressor.

    x             : (B, n_feat) float32, batch-major (no wrapper-side transpose/pad/cast).
    params        : list of (W, b) with torch.nn.Linear shapes — W: (out, in), b: (out,)
    bm            : batch tile (multiple of 128) or None for an auto pick; grid = ceil(B/bm).
    compute_dtype : dtype fed to the MXU matmuls (f32, or bf16 on any generation for ~2x MXU
                    throughput).  x stays f32 in HBM and is cast in-kernel; accumulation is f32.
    """
    B, n_feat = x.shape
    num_hidden = len(params) - 1
    assert num_hidden >= 1

    bm = _pick_bm(B, bm)
    grid = pl.cdiv(B, bm)
    b_pad = grid * bm                     # output is padded (full-lane stores); sliced below.

    inputs = [x]
    in_specs = [pl.BlockSpec((bm, n_feat), lambda i: (i, 0))]   # batch-major, partial last block OK

    # Hidden layers: torch-native (out, in) weights, column biases (broadcast along lanes).
    for w, b in params[:-1]:
        w_ = jnp.asarray(w).astype(compute_dtype)                 # (out, in)
        b_ = jnp.asarray(b).reshape(-1, 1).astype(jnp.float32)    # (out, 1)
        inputs += [w_, b_]
        in_specs += [
            pl.BlockSpec(w_.shape, lambda i: (0, 0)),
            pl.BlockSpec(b_.shape, lambda i: (0, 0)),
        ]

    # Output layer: pass W_out as a column so the kernel can do VPU-mul + sublane-reduce.
    w_out, b_out = params[-1]
    w_out_col = jnp.asarray(w_out).reshape(-1, 1).astype(jnp.float32)   # (h_last, 1)
    b_out_ = jnp.asarray(b_out).reshape(1, 1).astype(jnp.float32)       # (1, 1)
    inputs += [w_out_col, b_out_]
    in_specs += [
        pl.BlockSpec(w_out_col.shape, lambda i: (0, 0)),
        pl.BlockSpec(b_out_.shape, lambda i: (0, 0)),
    ]

    # Advisory cost estimate so XLA can overlap this call with neighbouring ops.
    dims = [n_feat] + [int(jnp.asarray(w).shape[0]) for (w, _) in params]
    wdt = jnp.dtype(compute_dtype).itemsize
    flops = 2 * B * sum(dims[i] * dims[i + 1] for i in range(len(dims) - 1))
    weight_bytes = sum(dims[i] * dims[i + 1] * wdt + dims[i + 1] * 4
                       for i in range(len(dims) - 1))
    bytes_accessed = B * n_feat * x.dtype.itemsize + weight_bytes + b_pad * 4
    cost = pl.CostEstimate(flops=flops, transcendentals=B, bytes_accessed=bytes_accessed)

    out_row = pl.pallas_call(
        _make_mlp_kernel(num_hidden),
        out_shape=jax.ShapeDtypeStruct((1, b_pad), x.dtype),
        grid_spec=pltpu.PrefetchScalarGridSpec(
            num_scalar_prefetch=0,
            grid=(grid,),
            in_specs=in_specs,
            out_specs=pl.BlockSpec((1, bm), lambda i: (0, i)),   # lane-dense output block
        ),
        compiler_params=pltpu.CompilerParams(
            # Batch tiles are independent -> shard across v7x's two TensorCores / megacore.
            dimension_semantics=("parallel",),
        ),
        cost_estimate=cost,
    )(*inputs)

    # Padded lanes (if any) contain garbage from the partial last block; rows are independent,
    # so slicing them off here is exact.
    return out_row[:, :B].reshape(B, 1)


def init_params(key, n_feat, hidden_layers):
    """Deterministic init matching the torch module's layer shapes.
    Linear weights are (out_features, in_features), biases (out_features,)."""
    dims = [n_feat] + list(hidden_layers) + [1]
    params = []
    for i in range(len(dims) - 1):
        key, kw, kb = jax.random.split(key, 3)
        bound = 1.0 / jnp.sqrt(dims[i])
        w = jax.random.uniform(kw, (dims[i + 1], dims[i]),
                               minval=-bound, maxval=bound, dtype=jnp.float32)
        b = jax.random.uniform(kb, (dims[i + 1],),
                               minval=-bound, maxval=bound, dtype=jnp.float32)
        params.append((w, b))
    return params


def reference_forward(x, params):
    """Pure-JAX reference of the torch forward (for sanity check)."""
    h = x
    for (w, b) in params[:-1]:
        h = jnp.maximum(h @ w.T + b, 0.0)
    w, b = params[-1]
    return jax.nn.sigmoid(h @ w.T + b)


if __name__ == "__main__":
    key = jax.random.PRNGKey(0)
    n_feat = 32
    hidden_layers = [64, 32]
    batch = 500   # not a tile multiple -> exercises the partial-last-block path (auto bm=256, grid=2)

    kx, kp = jax.random.split(key)
    x = jax.random.normal(kx, (batch, n_feat), dtype=jnp.float32)
    params = init_params(kp, n_feat, hidden_layers)

    ref = reference_forward(x, params)

    # f32 path (tight check). Auto bm picks 256 -> grid=(2,), even & parallel across TCs.
    out = jax.block_until_ready(simple_nn_regressor_forward(x, params))
    assert out.shape == (batch, 1)
    assert jnp.allclose(out, ref, atol=1e-4, rtol=1e-4)

    # bf16 MXU-input path (valid on v5e/v6e/v7x); x is cast in-kernel, elementwise work stays f32.
    out_bf16 = jax.block_until_ready(
        simple_nn_regressor_forward(x, params, compute_dtype=jnp.bfloat16))
    assert out_bf16.shape == (batch, 1)
    assert jnp.allclose(out_bf16, ref, atol=5e-2, rtol=5e-2)

    # Explicit larger-tile path (what you'd use for big B on v6e/v7x): bm request is clamped
    # for this small batch but exercises the bm override plumbing.
    out_big = jax.block_until_ready(simple_nn_regressor_forward(x, params, bm=512))
    assert jnp.allclose(out_big, ref, atol=1e-4, rtol=1e-4)

    print("KERNEL_OK")
</pallas_src>

<mosaic_0001>
module attributes {stable_mosaic.version = 11 : i64} {
  func.func @kernel(%arg0: i32, %arg1: memref<256x32xf32, #tpu.memory_space<vmem>>, %arg2: memref<64x32xf32, #tpu.memory_space<vmem>>, %arg3: memref<64x1xf32, #tpu.memory_space<vmem>>, %arg4: memref<32x64xf32, #tpu.memory_space<vmem>>, %arg5: memref<32x1xf32, #tpu.memory_space<vmem>>, %arg6: memref<32x1xf32, #tpu.memory_space<vmem>>, %arg7: memref<1x1xf32, #tpu.memory_space<vmem>>, %arg8: memref<1x256xf32, #tpu.memory_space<vmem>>) attributes {dimension_semantics = [#tpu.dimension_semantics<parallel>], iteration_bounds = array<i64: 2>, scalar_prefetch = 0 : i64, scratch_operands = 0 : i64, tpu.core_type = #tpu.core_type<tc>, window_params = [{transform_indices = @transform_0, window_bounds = array<i64: 256, 32>}, {pipeline_mode = #tpu.pipeline_mode<synchronous>, transform_indices = @transform_1, window_bounds = array<i64: 64, 32>}, {pipeline_mode = #tpu.pipeline_mode<synchronous>, transform_indices = @transform_2, window_bounds = array<i64: 64, 1>}, {pipeline_mode = #tpu.pipeline_mode<synchronous>, transform_indices = @transform_3, window_bounds = array<i64: 32, 64>}, {pipeline_mode = #tpu.pipeline_mode<synchronous>, transform_indices = @transform_4, window_bounds = array<i64: 32, 1>}, {pipeline_mode = #tpu.pipeline_mode<synchronous>, transform_indices = @transform_5, window_bounds = array<i64: 32, 1>}, {pipeline_mode = #tpu.pipeline_mode<synchronous>, transform_indices = @transform_6, window_bounds = array<i64: 1, 1>}, {transform_indices = @transform_7, window_bounds = array<i64: 1, 256>}]} {
    %c0 = arith.constant 0 : index
    %c0_0 = arith.constant 0 : index
    %0 = vector.load %arg2[%c0, %c0_0] : memref<64x32xf32, #tpu.memory_space<vmem>>, vector<64x32xf32>
    %c0_1 = arith.constant 0 : index
    %c0_2 = arith.constant 0 : index
    %1 = vector.load %arg3[%c0_1, %c0_2] : memref<64x1xf32, #tpu.memory_space<vmem>>, vector<64x1xf32>
    %c0_3 = arith.constant 0 : index
    %c0_4 = arith.constant 0 : index
    %2 = vector.load %arg1[%c0_3, %c0_4] : memref<256x32xf32, #tpu.memory_space<vmem>>, vector<256x32xf32>
    %cst = arith.constant dense<0.000000e+00> : vector<64x256xf32>
    %3 = tpu.matmul %0, %2, %cst {dimension_numbers = #tpu.dot_dimension_numbers<[1], [1], [0], [0], [0, 0, 1, 0], [], []>} : vector<64x32xf32>, vector<256x32xf32>, vector<64x256xf32> -> vector<64x256xf32>
    %4 = vector.broadcast %1 : vector<64x1xf32> to vector<64x256xf32>
    %5 = arith.addf %3, %4 : vector<64x256xf32>
    %cst_5 = arith.constant 0.000000e+00 : f32
    %6 = vector.broadcast %cst_5 : f32 to vector<64x256xf32>
    %7 = arith.maximumf %5, %6 : vector<64x256xf32>
    %c0_6 = arith.constant 0 : index
    %c0_7 = arith.constant 0 : index
    %8 = vector.load %arg4[%c0_6, %c0_7] : memref<32x64xf32, #tpu.memory_space<vmem>>, vector<32x64xf32>
    %c0_8 = arith.constant 0 : index
    %c0_9 = arith.constant 0 : index
    %9 = vector.load %arg5[%c0_8, %c0_9] : memref<32x1xf32, #tpu.memory_space<vmem>>, vector<32x1xf32>
    %cst_10 = arith.constant dense<0.000000e+00> : vector<32x256xf32>
    %10 = tpu.matmul %8, %7, %cst_10 {dimension_numbers = #tpu.dot_dimension_numbers<[1], [0], [0], [1], [0, 0, 1, 1], [], []>} : vector<32x64xf32>, vector<64x256xf32>, vector<32x256xf32> -> vector<32x256xf32>
    %11 = vector.broadcast %9 : vector<32x1xf32> to vector<32x256xf32>
    %12 = arith.addf %10, %11 : vector<32x256xf32>
    %cst_11 = arith.constant 0.000000e+00 : f32
    %13 = vector.broadcast %cst_11 : f32 to vector<32x256xf32>
    %14 = arith.maximumf %12, %13 : vector<32x256xf32>
    %c0_12 = arith.constant 0 : index
    %c0_13 = arith.constant 0 : index
    %15 = vector.load %arg6[%c0_12, %c0_13] : memref<32x1xf32, #tpu.memory_space<vmem>>, vector<32x1xf32>
    %c0_14 = arith.constant 0 : index
    %c0_15 = arith.constant 0 : index
    %16 = vector.load %arg7[%c0_14, %c0_15] : memref<1x1xf32, #tpu.memory_space<vmem>>, vector<1x1xf32>
    %17 = vector.broadcast %15 : vector<32x1xf32> to vector<32x256xf32>
    %18 = arith.mulf %14, %17 : vector<32x256xf32>
    %cst_16 = arith.constant dense<0.000000e+00> : vector<256xf32>
    %19 = vector.multi_reduction <add>, %18, %cst_16 [0] : vector<32x256xf32> to vector<256xf32>
    %20 = vector.shape_cast %19 : vector<256xf32> to vector<1x256xf32>
    %21 = vector.broadcast %16 : vector<1x1xf32> to vector<1x256xf32>
    %22 = arith.addf %20, %21 : vector<1x256xf32>
    %cst_17 = arith.constant 5.000000e-01 : f32
    %23 = vector.broadcast %cst_17 : f32 to vector<1x256xf32>
    %24 = arith.mulf %23, %22 : vector<1x256xf32>
    %25 = math.tanh %24 : vector<1x256xf32>
    %cst_18 = arith.constant 1.000000e+00 : f32
    %26 = vector.broadcast %cst_18 : f32 to vector<1x256xf32>
    %27 = arith.addf %25, %26 : vector<1x256xf32>
    %cst_19 = arith.constant 5.000000e-01 : f32
    %28 = vector.broadcast %cst_19 : f32 to vector<1x256xf32>
    %29 = arith.mulf %28, %27 : vector<1x256xf32>
    %c0_20 = arith.constant 0 : index
    %c0_21 = arith.constant 0 : index
    %30 = vector.load %arg8[%c0_20, %c0_21] : memref<1x256xf32, #tpu.memory_space<vmem>>, vector<1x256xf32>
    tpu.vector_store %arg8[%c0_20, %c0_21], %29 {strides = array<i32>} : memref<1x256xf32, #tpu.memory_space<vmem>>, vector<1x256xf32>,
    return
  }
  func.func @transform_0(%arg0: i32) -> (i32, i32) {
    %c0_i32 = arith.constant 0 : i32
    %c0_i32_0 = arith.constant 0 : i32
    return %arg0, %c0_i32 : i32, i32
  }
  func.func @transform_1(%arg0: i32) -> (i32, i32) {
    %c0_i32 = arith.constant 0 : i32
    %c0_i32_0 = arith.constant 0 : i32
    %c0_i32_1 = arith.constant 0 : i32
    return %c0_i32, %c0_i32_0 : i32, i32
  }
  func.func @transform_2(%arg0: i32) -> (i32, i32) {
    %c0_i32 = arith.constant 0 : i32
    %c0_i32_0 = arith.constant 0 : i32
    %c0_i32_1 = arith.constant 0 : i32
    return %c0_i32, %c0_i32_0 : i32, i32
  }
  func.func @transform_3(%arg0: i32) -> (i32, i32) {
    %c0_i32 = arith.constant 0 : i32
    %c0_i32_0 = arith.constant 0 : i32
    %c0_i32_1 = arith.constant 0 : i32
    return %c0_i32, %c0_i32_0 : i32, i32
  }
  func.func @transform_4(%arg0: i32) -> (i32, i32) {
    %c0_i32 = arith.constant 0 : i32
    %c0_i32_0 = arith.constant 0 : i32
    %c0_i32_1 = arith.constant 0 : i32
    return %c0_i32, %c0_i32_0 : i32, i32
  }
  func.func @transform_5(%arg0: i32) -> (i32, i32) {
    %c0_i32 = arith.constant 0 : i32
    %c0_i32_0 = arith.constant 0 : i32
    %c0_i32_1 = arith.constant 0 : i32
    return %c0_i32, %c0_i32_0 : i32, i32
  }
  func.func @transform_6(%arg0: i32) -> (i32, i32) {
    %c0_i32 = arith.constant 0 : i32
    %c0_i32_0 = arith.constant 0 : i32
    %c0_i32_1 = arith.constant 0 : i32
    return %c0_i32, %c0_i32_0 : i32, i32
  }
  func.func @transform_7(%arg0: i32) -> (i32, i32) {
    %c0_i32 = arith.constant 0 : i32
    %c0_i32_0 = arith.constant 0 : i32
    return %c0_i32, %arg0 : i32, i32
  }
}

</mosaic_0001>

<llo_original>
// kernel: tpu_custom_call.1
$region0: #{tpu_custom_call.1}
  #allocation0 [shape = 'u32[]', space=smem, size = 0x4, offset = 0x4, fixed_abs, tag = 'smem constant byte address 0x4 - core index']
  #allocation1 [shape = 'u32[72,128]{1,0:T(1,128)}', space=vmem, size = 0x9000, scoped, tag = 'internal scratch']
  #allocation2 [shape = 'f32[1,1]{1,0:T(1,128)S(1)}', space=vmem, size = 0x200, scoped, tag = 'scoped memory for tpu_custom_call.1']
  %s0 = inlined_call_operand.vmem [shape: f32[500,32], index: 0, kind: input, shape index: {}]
  %s1 = inlined_call_operand.vmem [shape: f32[64,32], index: 1, kind: input, shape index: {}]
  %s2 = inlined_call_operand.vmem [shape: f32[64,1], index: 2, kind: input, shape index: {}]
  %s3 = inlined_call_operand.vmem [shape: f32[32,64], index: 3, kind: input, shape index: {}]
  %s4 = inlined_call_operand.vmem [shape: f32[32,1], index: 4, kind: input, shape index: {}]
  %s5 = inlined_call_operand.vmem [shape: f32[32,1], index: 5, kind: input, shape index: {}]
  %s6 = inlined_call_operand.<no memory space> [shape: f32[1,1], index: 6, kind: input, shape index: {}]
  %s7 = inlined_call_operand.hbm [shape: f32[1,512], index: 7, kind: output, shape index: {}]
  %s8 = sld [smem:[#allocation0]]
  $region61: #{tpu_custom_call.1} parent=0
    _
  %s10 = ssub.s32 1, %s8
  %s11 = scalar_select 0, %s10, %s8
  %v12 = vstv %s6
  %13 = vst [vmem:[#allocation2] sm:$0x1] %v12
  $region1: #{tpu_custom_call.1} parent=0
    #allocation3 [shape = 'u8[2048]{0}', space=vmem, size = 0x800, scoped, tag = 'output window, operand 0']
    #allocation4 [shape = 's32[2]{0}', space=sflag, size = 0x8, scoped, tag = 'scoped memory for tpu_custom_call.1']
    %14 = vsyncpa [#allocation4], 0
    %s15 = scalar_lea.sflag [#allocation4], 1
    %16 = vsyncpa %s15, 0
    loop: start=0, step=1, limit=4
    $region2: #{tpu_custom_call.1} parent=1 // loop_pre_header
      _
    $region3: #{tpu_custom_call.1} parent=1 // loop_header
      %s18 = sphi 0, %s22
      %p19 = scmp.ge.s32.totalorder %s18, 4
      %s28 = sphi 0, %s30
      %s31 = sphi 0, %s28
      %s32 = sphi 0, %s31
      %s48 = sphi 0, %s32
      %s52 = sphi 0, %s52
      %s54 = sphi 0, %s52
      %s55 = sphi 0, %s54
      %s69 = sphi 0, %s55
      %s73 = sphi 0, %s73
      %s75 = sphi 0, %s73
      %s76 = sphi 0, %s75
      %s90 = sphi 0, %s76
      %s94 = sphi 0, %s94
      %s96 = sphi 0, %s94
      %s97 = sphi 0, %s96
      %s111 = sphi 0, %s97
      %s115 = sphi 0, %s115
      %s117 = sphi 0, %s115
      %s118 = sphi 0, %s117
      %s132 = sphi 0, %s118
      %s136 = sphi 0, %s136
      %s138 = sphi 0, %s136
      %s139 = sphi 0, %s138
      %s153 = sphi 0, %s139
      %s157 = sphi 0, %s157
      %s159 = sphi 0, %s157
      %s160 = sphi 0, %s159
      %s174 = sphi 0, %s160
      %s180 = sphi 0, %s182
      %s183 = sphi 0, %s180
      %s184 = sphi 0, %s183
      %s200 = sphi 0, %s184
    $region4: #{tpu_custom_call.1} parent=1 // loop_header_branch
      %21 = sbr.rel (%p19) target = $region8
    $region5: #{tpu_custom_call.1} parent=1 // loop_body
      %s23 = ssub.s32 %s18, 1
      %s24 = ssub.s32 %s18, 2
      %s25 = sadd.s32 %s18, 1
      %s26 = ssub.s32 %s18, %s25
      %p27 = scmp.eq.s32.totalorder %s26, 0
      %s29 = sadd.s32 %s28, 1
      %s30 = scalar_select %p27, %s28, %s29
      %p33 = pneg %p27
      %p34 = scmp.eq.s32.totalorder %s18, 1
      %p35 = por %p33, %p34
      %p36 = scmp.ne.s32.totalorder %s28, %s31
      %p37 = scmp.eq.s32.totalorder %s18, 0
      %p38 = por %p36, %p37
      %p39 = scmp.ne.s32.totalorder %s28, %s31
      %p40 = scmp.eq.s32.totalorder %s23, 1
      %p41 = por %p39, %p40
      %p42 = scmp.ne.s32.totalorder %s31, %s32
      %p43 = scmp.eq.s32.totalorder %s23, 0
      %p44 = por %p42, %p43
      %p45 = scmp.ne.s32.totalorder %s31, %s32
      %p46 = scmp.eq.s32.totalorder %s24, 1
      %p47 = por %p45, %p46
      %p49 = scmp.ne.s32.totalorder %s32, %s48
      %p50 = scmp.eq.s32.totalorder %s24, 0
      %p51 = por %p49, %p50
      %s53 = sadd.s32 %s52, 1
      %p56 = scmp.eq.s32.totalorder %s18, 1
      %p57 = scmp.ne.s32.totalorder %s52, %s54
      %p58 = scmp.eq.s32.totalorder %s18, 0
      %p59 = por %p57, %p58
      %p60 = scmp.ne.s32.totalorder %s52, %s54
      %p61 = scmp.eq.s32.totalorder %s23, 1
      %p62 = por %p60, %p61
      %p63 = scmp.ne.s32.totalorder %s54, %s55
      %p64 = scmp.eq.s32.totalorder %s23, 0
      %p65 = por %p63, %p64
      %p66 = scmp.ne.s32.totalorder %s54, %s55
      %p67 = scmp.eq.s32.totalorder %s24, 1
      %p68 = por %p66, %p67
      %p70 = scmp.ne.s32.totalorder %s55, %s69
      %p71 = scmp.eq.s32.totalorder %s24, 0
      %p72 = por %p70, %p71
      %s74 = sadd.s32 %s73, 1
      %p77 = scmp.eq.s32.totalorder %s18, 1
      %p78 = scmp.ne.s32.totalorder %s73, %s75
      %p79 = scmp.eq.s32.totalorder %s18, 0
      %p80 = por %p78, %p79
      %p81 = scmp.ne.s32.totalorder %s73, %s75
      %p82 = scmp.eq.s32.totalorder %s23, 1
      %p83 = por %p81, %p82
      %p84 = scmp.ne.s32.totalorder %s75, %s76
      %p85 = scmp.eq.s32.totalorder %s23, 0
      %p86 = por %p84, %p85
      %p87 = scmp.ne.s32.totalorder %s75, %s76
      %p88 = scmp.eq.s32.totalorder %s24, 1
      %p89 = por %p87, %p88
      %p91 = scmp.ne.s32.totalorder %s76, %s90
      %p92 = scmp.eq.s32.totalorder %s24, 0
      %p93 = por %p91, %p92
      %s95 = sadd.s32 %s94, 1
      %p98 = scmp.eq.s32.totalorder %s18, 1
      %p99 = scmp.ne.s32.totalorder %s94, %s96
      %p100 = scmp.eq.s32.totalorder %s18, 0
      %p101 = por %p99, %p100
      %p102 = scmp.ne.s32.totalorder %s94, %s96
      %p103 = scmp.eq.s32.totalorder %s23, 1
      %p104 = por %p102, %p103
      %p105 = scmp.ne.s32.totalorder %s96, %s97
      %p106 = scmp.eq.s32.totalorder %s23, 0
      %p107 = por %p105, %p106
      %p108 = scmp.ne.s32.totalorder %s96, %s97
      %p109 = scmp.eq.s32.totalorder %s24, 1
      %p110 = por %p108, %p109
      %p112 = scmp.ne.s32.totalorder %s97, %s111
      %p113 = scmp.eq.s32.totalorder %s24, 0
      %p114 = por %p112, %p113
      %s116 = sadd.s32 %s115, 1
      %p119 = scmp.eq.s32.totalorder %s18, 1
      %p120 = scmp.ne.s32.totalorder %s115, %s117
      %p121 = scmp.eq.s32.totalorder %s18, 0
      %p122 = por %p120, %p121
      %p123 = scmp.ne.s32.totalorder %s115, %s117
      %p124 = scmp.eq.s32.totalorder %s23, 1
      %p125 = por %p123, %p124
      %p126 = scmp.ne.s32.totalorder %s117, %s118
      %p127 = scmp.eq.s32.totalorder %s23, 0
      %p128 = por %p126, %p127
      %p129 = scmp.ne.s32.totalorder %s117, %s118
      %p130 = scmp.eq.s32.totalorder %s24, 1
      %p131 = por %p129, %p130
      %p133 = scmp.ne.s32.totalorder %s118, %s132
      %p134 = scmp.eq.s32.totalorder %s24, 0
      %p135 = por %p133, %p134
      %s137 = sadd.s32 %s136, 1
      %p140 = scmp.eq.s32.totalorder %s18, 1
      %p141 = scmp.ne.s32.totalorder %s136, %s138
      %p142 = scmp.eq.s32.totalorder %s18, 0
      %p143 = por %p141, %p142
      %p144 = scmp.ne.s32.totalorder %s136, %s138
      %p145 = scmp.eq.s32.totalorder %s23, 1
      %p146 = por %p144, %p145
      %p147 = scmp.ne.s32.totalorder %s138, %s139
      %p148 = scmp.eq.s32.totalorder %s23, 0
      %p149 = por %p147, %p148
      %p150 = scmp.ne.s32.totalorder %s138, %s139
      %p151 = scmp.eq.s32.totalorder %s24, 1
      %p152 = por %p150, %p151
      %p154 = scmp.ne.s32.totalorder %s139, %s153
      %p155 = scmp.eq.s32.totalorder %s24, 0
      %p156 = por %p154, %p155
      %s158 = sadd.s32 %s157, 1
      %p161 = scmp.eq.s32.totalorder %s18, 1
      %p162 = scmp.ne.s32.totalorder %s157, %s159
      %p163 = scmp.eq.s32.totalorder %s18, 0
      %p164 = por %p162, %p163
      %p165 = scmp.ne.s32.totalorder %s157, %s159
      %p166 = scmp.eq.s32.totalorder %s23, 1
      %p167 = por %p165, %p166
      %p168 = scmp.ne.s32.totalorder %s159, %s160
      %p169 = scmp.eq.s32.totalorder %s23, 0
      %p170 = por %p168, %p169
      %p171 = scmp.ne.s32.totalorder %s159, %s160
      %p172 = scmp.eq.s32.totalorder %s24, 1
      %p173 = por %p171, %p172
      %p175 = scmp.ne.s32.totalorder %s160, %s174
      %p176 = scmp.eq.s32.totalorder %s24, 0
      %p177 = por %p175, %p176
      %s178 = ssub.s32 %s18, %s25
      %p179 = scmp.eq.s32.totalorder %s178, 0
      %s181 = sadd.s32 %s180, 1
      %s182 = scalar_select %p179, %s180, %s181
      %p185 = pneg %p179
      %p186 = scmp.eq.s32.totalorder %s18, 1
      %p187 = por %p185, %p186
      %p188 = scmp.ne.s32.totalorder %s180, %s183
      %p189 = scmp.eq.s32.totalorder %s18, 0
      %p190 = por %p188, %p189
      %p191 = scmp.ne.s32.totalorder %s180, %s183
      %p192 = scmp.eq.s32.totalorder %s23, 1
      %p193 = por %p191, %p192
      %p194 = scmp.ne.s32.totalorder %s183, %s184
      %p195 = scmp.eq.s32.totalorder %s23, 0
      %p196 = por %p194, %p195
      %p197 = scmp.ne.s32.totalorder %s183, %s184
      %p198 = scmp.eq.s32.totalorder %s24, 1
      %p199 = por %p197, %p198
      %p201 = scmp.ne.s32.totalorder %s184, %s200
      %p202 = scmp.eq.s32.totalorder %s24, 0
      %p203 = por %p201, %p202
      %p204 = scmp.le.s32.totalorder 1, %s18
      %p205 = scmp.lt.s32.totalorder %s18, 3
      %p206 = pnand %p204, %p205
      %p207 = pneg %p206
      // Predicated region
      $region9: #{tpu_custom_call.1} parent=5 // pred_check
        _
      $region10: #{tpu_custom_call.1} parent=5 // pred_check_branch
        %209 = sbr.rel (%p206) target = $region12
      $region11: #{tpu_custom_call.1} parent=5 // pred_region
        %s210 = ssub.s32 %s18, 1
        // Predicated region
        $region13: #{tpu_custom_call.1} parent=11 // pred_check
          %p211 = pneg %p65
        $region14: #{tpu_custom_call.1} parent=11 // pred_check_branch
          %213 = sbr.rel (%p211) target = $region16
        $region15: #{tpu_custom_call.1} parent=11 // pred_region
          _
        $region16: #{tpu_custom_call.1} parent=11 // pred_fallthru
          _
        // Predicated region
        $region17: #{tpu_custom_call.1} parent=11 // pred_check
          %p214 = pneg %p86
        $region18: #{tpu_custom_call.1} parent=11 // pred_check_branch
          %216 = sbr.rel (%p214) target = $region20
        $region19: #{tpu_custom_call.1} parent=11 // pred_region
          _
        $region20: #{tpu_custom_call.1} parent=11 // pred_fallthru
          _
        // Predicated region
        $region21: #{tpu_custom_call.1} parent=11 // pred_check
          %p217 = pneg %p107
        $region22: #{tpu_custom_call.1} parent=11 // pred_check_branch
          %219 = sbr.rel (%p217) target = $region24
        $region23: #{tpu_custom_call.1} parent=11 // pred_region
          _
        $region24: #{tpu_custom_call.1} parent=11 // pred_fallthru
          _
        // Predicated region
        $region25: #{tpu_custom_call.1} parent=11 // pred_check
          %p220 = pneg %p128
        $region26: #{tpu_custom_call.1} parent=11 // pred_check_branch
          %222 = sbr.rel (%p220) target = $region28
        $region27: #{tpu_custom_call.1} parent=11 // pred_region
          _
        $region28: #{tpu_custom_call.1} parent=11 // pred_fallthru
          _
        // Predicated region
        $region29: #{tpu_custom_call.1} parent=11 // pred_check
          %p223 = pneg %p149
        $region30: #{tpu_custom_call.1} parent=11 // pred_check_branch
          %225 = sbr.rel (%p223) target = $region32
        $region31: #{tpu_custom_call.1} parent=11 // pred_region
          _
        $region32: #{tpu_custom_call.1} parent=11 // pred_fallthru
          _
        // Predicated region
        $region33: #{tpu_custom_call.1} parent=11 // pred_check
          %p226 = pneg %p170
        $region34: #{tpu_custom_call.1} parent=11 // pred_check_branch
          %228 = sbr.rel (%p226) target = $region36
        $region35: #{tpu_custom_call.1} parent=11 // pred_region
          _
        $region36: #{tpu_custom_call.1} parent=11 // pred_fallthru
          _
      $region12: #{tpu_custom_call.1} parent=5 // pred_fallthru
        _
      %p229 = scmp.lt.s32.totalorder %s18, 2
      // Predicated region
      $region37: #{tpu_custom_call.1} parent=5 // pred_check
        %p230 = pneg %p229
      $region38: #{tpu_custom_call.1} parent=5 // pred_check_branch
        %232 = sbr.rel (%p230) target = $region40
      $region39: #{tpu_custom_call.1} parent=5 // pred_region
        // Predicated region
        $region41: #{tpu_custom_call.1} parent=39 // pred_check
          %p233 = pneg %p38
        $region42: #{tpu_custom_call.1} parent=39 // pred_check_branch
          %235 = sbr.rel (%p233) target = $region44
        $region43: #{tpu_custom_call.1} parent=39 // pred_region
          %s236 = smul.u32 32, %s18
          %s237 = ssub.s32 63, %s236
          %p238 = scmp.lt.s32.totalorder %s237, 32
          %s239 = scalar_select %p238, %s237, 32
          %s240 = smul.u32 8, %s239
          %p241 = scmp.lt.s32.totalorder %s236, 62
          %s242 = scalar_select %p241, %s236, 62
          %s243 = smul.addr %s242, 8
          %s244 = scalar_lea.vmem %s0, %s243
          %s245 = smul.u32 32, %s18
          %s246 = ssub.s32 63, %s245
          %p247 = scmp.lt.s32.totalorder %s246, 32
          %s248 = scalar_select %p247, %s246, 32
          %s249 = smul.u32 8, %s248
        $region44: #{tpu_custom_call.1} parent=39 // pred_fallthru
          _
      $region40: #{tpu_custom_call.1} parent=5 // pred_fallthru
        _
      %p250 = scmp.le.s32.totalorder 1, %s18
      %p251 = scmp.lt.s32.totalorder %s18, 3
      %p252 = pnand %p250, %p251
      %p253 = pneg %p252
      // Predicated region
      $region45: #{tpu_custom_call.1} parent=5 // pred_check
        _
      $region46: #{tpu_custom_call.1} parent=5 // pred_check_branch
        %255 = sbr.rel (%p252) target = $region48
      $region47: #{tpu_custom_call.1} parent=5 // pred_region
        %s256 = ssub.s32 %s18, 1
        %s257 = smul.u32 32, %s23
        %s258 = ssub.s32 63, %s257
        %p259 = scmp.lt.s32.totalorder %s258, 32
        %s260 = scalar_select %p259, %s258, 32
        %s261 = smul.u32 8, %s260
        %p262 = scmp.lt.s32.totalorder %s257, 62
        %s263 = scalar_select %p262, %s257, 62
        %s264 = smul.addr %s263, 8
        %s265 = scalar_lea.vmem %s0, %s264
        %p266 = pneg %p44
        %p267 = pneg %p41
        %p268 = pneg %p65
        %p269 = pneg %p62
        %p270 = pneg %p86
        %p271 = pneg %p83
        %p272 = pneg %p107
        %p273 = pneg %p104
        %p274 = pneg %p128
        %p275 = pneg %p125
        %p276 = pneg %p149
        %p277 = pneg %p146
        %p278 = pneg %p170
        %p279 = pneg %p167
        %p280 = pneg %p196
        %p281 = pneg %p193
        %s282 = sand.u32 %s183, 1
        %s283 = scalar_lea.sflag [#allocation4], %s282
        %s284 = sand.u32 %s183, 1
        %s285 = smul.addr %s284, 2
        %s286 = scalar_lea.vmem [#allocation3], %s285
        %s287 = smul.u32 32, %s23
        %s288 = ssub.s32 63, %s287
        %p289 = scmp.lt.s32.totalorder %s288, 32
        %s290 = scalar_select %p289, %s288, 32
        %s291 = smul.u32 8, %s290
        %p292 = scmp.lt.s32.totalorder %s287, 62
        %s293 = scalar_select %p292, %s287, 62
        %s294 = smul.addr %s293, 8
        %s295 = scalar_lea.vmem %s0, %s294
        %s296 = smul.u32 32, %s23
        %s297 = ssub.s32 63, %s296
        %p298 = scmp.lt.s32.totalorder %s297, 32
        %s299 = scalar_select %p298, %s297, 32
        %s300 = smul.u32 8, %s299
        %s301 = smul.u32 2, %s23
        %v302 = vld [vmem:[%s1] sm:$0xff]
        %v303 = vld [vmem:[%s1 + $0x8] sm:$0xff]
        %v304 = vld [vmem:[%s1 + $0x10] sm:$0xff]
        %v305 = vld [vmem:[%s1 + $0x18] sm:$0xff]
        %v306 = vld [vmem:[%s1 + $0x20] sm:$0xff]
        %v307 = vld [vmem:[%s1 + $0x28] sm:$0xff]
        %v308 = vld [vmem:[%s1 + $0x30] sm:$0xff]
        %v309 = vld [vmem:[%s1 + $0x38] sm:$0xff]
        %v310 = vld [vmem:[%s2] sm:$0xff]
        %v311 = vld [vmem:[%s2 + $0x8] sm:$0xff]
        %v312 = vld [vmem:[%s2 + $0x10] sm:$0xff]
        %v313 = vld [vmem:[%s2 + $0x18] sm:$0xff]
        %v314 = vld [vmem:[%s2 + $0x20] sm:$0xff]
        %v315 = vld [vmem:[%s2 + $0x28] sm:$0xff]
        %v316 = vld [vmem:[%s2 + $0x30] sm:$0xff]
        %v317 = vld [vmem:[%s2 + $0x38] sm:$0xff]
        %v318 = vld [vmem:[%s295] sm:$0xff]
        %v319 = vld [vmem:[%s295 + $0x8] sm:$0xff]
        %v320 = vld [vmem:[%s295 + $0x10] sm:$0xff]
        %v321 = vld [vmem:[%s295 + $0x18] sm:$0xff]
        %v322 = vld [vmem:[%s295 + $0x20] sm:$0xff]
        %v323 = vld [vmem:[%s295 + $0x28] sm:$0xff]
        %v324 = vld [vmem:[%s295 + $0x30] sm:$0xff]
        %v325 = vld [vmem:[%s295 + $0x38] sm:$0xff]
        %v326 = vld [vmem:[%s295 + $0x40] sm:$0xff]
        %v327 = vld [vmem:[%s295 + $0x48] sm:$0xff]
        %v328 = vld [vmem:[%s295 + $0x50] sm:$0xff]
        %v329 = vld [vmem:[%s295 + $0x58] sm:$0xff]
        %v330 = vld [vmem:[%s295 + $0x60] sm:$0xff]
        %v331 = vld [vmem:[%s295 + $0x68] sm:$0xff]
        %v332 = vld [vmem:[%s295 + $0x70] sm:$0xff]
        %v333 = vld [vmem:[%s295 + $0x78] sm:$0xff]
        %v334 = vld [vmem:[%s295 + $0x80] sm:$0xff]
        %v335 = vld [vmem:[%s295 + $0x88] sm:$0xff]
        %v336 = vld [vmem:[%s295 + $0x90] sm:$0xff]
        %v337 = vld [vmem:[%s295 + $0x98] sm:$0xff]
        %v338 = vld [vmem:[%s295 + $0xa0] sm:$0xff]
        %v339 = vld [vmem:[%s295 + $0xa8] sm:$0xff]
        %v340 = vld [vmem:[%s295 + $0xb0] sm:$0xff]
        %v341 = vld [vmem:[%s295 + $0xb8] sm:$0xff]
        %v342 = vld [vmem:[%s295 + $0xc0] sm:$0xff]
        %v343 = vld [vmem:[%s295 + $0xc8] sm:$0xff]
        %v344 = vld [vmem:[%s295 + $0xd0] sm:$0xff]
        %v345 = vld [vmem:[%s295 + $0xd8] sm:$0xff]
        %v346 = vld [vmem:[%s295 + $0xe0] sm:$0xff]
        %v347 = vld [vmem:[%s295 + $0xe8] sm:$0xff]
        %v348 = vld [vmem:[%s295 + $0xf0] sm:$0xff]
        %v349 = vld [vmem:[%s295 + $0xf8] sm:$0xff]
        %351 = vset.pattern.permute.xlu0 0
        %352 = vperm.xlu0 %351, %v310
        %v353 = vpop.permute.xlu0 %352
        %356 = vset.pattern.permute.xlu0 0
        %357 = vperm.xlu0 %356, %v311
        %v358 = vpop.permute.xlu0 %357
        %361 = vset.pattern.permute.xlu0 0
        %362 = vperm.xlu0 %361, %v312
        %v363 = vpop.permute.xlu0 %362
        %366 = vset.pattern.permute.xlu0 0
        %367 = vperm.xlu0 %366, %v313
        %v368 = vpop.permute.xlu0 %367
        %371 = vset.pattern.permute.xlu0 0
        %372 = vperm.xlu0 %371, %v314
        %v373 = vpop.permute.xlu0 %372
        %376 = vset.pattern.permute.xlu0 0
        %377 = vperm.xlu0 %376, %v315
        %v378 = vpop.permute.xlu0 %377
        %381 = vset.pattern.permute.xlu0 0
        %382 = vperm.xlu0 %381, %v316
        %v383 = vpop.permute.xlu0 %382
        %386 = vset.pattern.permute.xlu0 0
        %387 = vperm.xlu0 %386, %v317
        %v388 = vpop.permute.xlu0 %387
        %vm390 = vcmask 261120
        %v392 = vsel %vm390, %v302, 0
        %v395 = vsel %vm390, %v303, 0
        %v398 = vsel %vm390, %v304, 0
        %v401 = vsel %vm390, %v305, 0
        %v404 = vsel %vm390, %v306, 0
        %v407 = vsel %vm390, %v307, 0
        %v410 = vsel %vm390, %v308, 0
        %v413 = vsel %vm390, %v309, 0
        %v416 = vsel %vm390, %v318, 0
        %v419 = vsel %vm390, %v319, 0
        %v422 = vsel %vm390, %v320, 0
        %v425 = vsel %vm390, %v321, 0
        %v428 = vsel %vm390, %v322, 0
        %v431 = vsel %vm390, %v323, 0
        %v434 = vsel %vm390, %v324, 0
        %v437 = vsel %vm390, %v325, 0
        %v440 = vsel %vm390, %v326, 0
        %v443 = vsel %vm390, %v327, 0
        %v446 = vsel %vm390, %v328, 0
        %v449 = vsel %vm390, %v329, 0
        %v452 = vsel %vm390, %v330, 0
        %v455 = vsel %vm390, %v331, 0
        %v458 = vsel %vm390, %v332, 0
        %v461 = vsel %vm390, %v333, 0
        %v464 = vsel %vm390, %v334, 0
        %v467 = vsel %vm390, %v335, 0
        %v470 = vsel %vm390, %v336, 0
        %v473 = vsel %vm390, %v337, 0
        %v476 = vsel %vm390, %v338, 0
        %v479 = vsel %vm390, %v339, 0
        %v482 = vsel %vm390, %v340, 0
        %v485 = vsel %vm390, %v341, 0
        %v488 = vsel %vm390, %v342, 0
        %v491 = vsel %vm390, %v343, 0
        %v494 = vsel %vm390, %v344, 0
        %v497 = vsel %vm390, %v345, 0
        %v500 = vsel %vm390, %v346, 0
        %v503 = vsel %vm390, %v347, 0
        %v506 = vsel %vm390, %v348, 0
        %v509 = vsel %vm390, %v349, 0
        %511 = vmatpush.xpose.msra.mxu0 %v461
        %512 = vmatpush.xpose.msra.mxu0 %v458
        %513 = vmatpush.xpose.msra.mxu0 %v455
        %514 = vmatpush.xpose.msra.mxu0 %v452
        %515 = vmatpush.xpose.msra.mxu0 %v449
        %516 = vmatpush.xpose.msra.mxu0 %v446
        %517 = vmatpush.xpose.msra.mxu0 %v443
        %518 = vmatpush.xpose.msra.mxu0 %v440
        %519 = vmatpush.xpose.msra.mxu0 %v437
        %520 = vmatpush.xpose.msra.mxu0 %v434
        %521 = vmatpush.xpose.msra.mxu0 %v431
        %522 = vmatpush.xpose.msra.mxu0 %v428
        %523 = vmatpush.xpose.msra.mxu0 %v425
        %524 = vmatpush.xpose.msra.mxu0 %v422
        %525 = vmatpush.xpose.msra.mxu0 %v419
        %526 = vmatpush.xpose.msra.mxu0 %v416
        %527 = vmatmul.f32.gmra.mxu0 %v392
        %v528 = vpop.f32.mrf.mxu0
        %v529 = vadd.f32 %v353, %v528
        %530 = vmatmul.f32.gmra.mxu0 %v395
        %v531 = vpop.f32.mrf.mxu0
        %v532 = vadd.f32 %v358, %v531
        %533 = vmatmul.f32.gmra.mxu0 %v398
        %v534 = vpop.f32.mrf.mxu0
        %v535 = vadd.f32 %v363, %v534
        %536 = vmatmul.f32.gmra.mxu0 %v401
        %v537 = vpop.f32.mrf.mxu0
        %v538 = vadd.f32 %v368, %v537
        %539 = vmatmul.f32.gmra.mxu0 %v404
        %v540 = vpop.f32.mrf.mxu0
        %v541 = vadd.f32 %v373, %v540
        %542 = vmatmul.f32.gmra.mxu0 %v407
        %v543 = vpop.f32.mrf.mxu0
        %v544 = vadd.f32 %v378, %v543
        %545 = vmatmul.f32.gmra.mxu0 %v410
        %v546 = vpop.f32.mrf.mxu0
        %v547 = vadd.f32 %v383, %v546
        %548 = vmatmul.f32.gmra.mxu0 %v413
        %v549 = vpop.f32.mrf.mxu0
        %v550 = vadd.f32 %v388, %v549
        %551 = vdwg.mxu0
        %552 = vmatpush.xpose.msra.mxu0 %v509
        %553 = vmatpush.xpose.msra.mxu0 %v506
        %554 = vmatpush.xpose.msra.mxu0 %v503
        %555 = vmatpush.xpose.msra.mxu0 %v500
        %556 = vmatpush.xpose.msra.mxu0 %v497
        %557 = vmatpush.xpose.msra.mxu0 %v494
        %558 = vmatpush.xpose.msra.mxu0 %v491
        %559 = vmatpush.xpose.msra.mxu0 %v488
        %560 = vmatpush.xpose.msra.mxu0 %v485
        %561 = vmatpush.xpose.msra.mxu0 %v482
        %562 = vmatpush.xpose.msra.mxu0 %v479
        %563 = vmatpush.xpose.msra.mxu0 %v476
        %564 = vmatpush.xpose.msra.mxu0 %v473
        %565 = vmatpush.xpose.msra.mxu0 %v470
        %566 = vmatpush.xpose.msra.mxu0 %v467
        %567 = vmatpush.xpose.msra.mxu0 %v464
        %568 = vmatmul.f32.gmra.mxu0 %v392
        %v569 = vpop.f32.mrf.mxu0
        %v570 = vadd.f32 %v353, %v569
        %571 = vmatmul.f32.gmra.mxu0 %v395
        %v572 = vpop.f32.mrf.mxu0
        %v573 = vadd.f32 %v358, %v572
        %574 = vmatmul.f32.gmra.mxu0 %v398
        %v575 = vpop.f32.mrf.mxu0
        %v576 = vadd.f32 %v363, %v575
        %577 = vmatmul.f32.gmra.mxu0 %v401
        %v578 = vpop.f32.mrf.mxu0
        %v579 = vadd.f32 %v368, %v578
        %580 = vmatmul.f32.gmra.mxu0 %v404
        %v581 = vpop.f32.mrf.mxu0
        %v582 = vadd.f32 %v373, %v581
        %583 = vmatmul.f32.gmra.mxu0 %v407
        %v584 = vpop.f32.mrf.mxu0
        %v585 = vadd.f32 %v378, %v584
        %586 = vmatmul.f32.gmra.mxu0 %v410
        %v587 = vpop.f32.mrf.mxu0
        %v588 = vadd.f32 %v383, %v587
        %589 = vmatmul.f32.gmra.mxu0 %v413
        %v590 = vpop.f32.mrf.mxu0
        %v591 = vadd.f32 %v388, %v590
        %592 = vdwg.mxu0
        %v593 = vmax.f32 %v529, 0.0
        %v594 = vmax.f32 %v570, 0.0
        %v595 = vmax.f32 %v532, 0.0
        %v596 = vmax.f32 %v573, 0.0
        %v597 = vmax.f32 %v535, 0.0
        %v598 = vmax.f32 %v576, 0.0
        %v599 = vmax.f32 %v538, 0.0
        %v600 = vmax.f32 %v579, 0.0
        %v601 = vmax.f32 %v541, 0.0
        %v602 = vmax.f32 %v582, 0.0
        %v603 = vmax.f32 %v544, 0.0
        %v604 = vmax.f32 %v585, 0.0
        %v605 = vmax.f32 %v547, 0.0
        %v606 = vmax.f32 %v588, 0.0
        %v607 = vmax.f32 %v550, 0.0
        %v608 = vmax.f32 %v591, 0.0
        %v609 = vld [vmem:[%s3] sm:$0xff]
        %v610 = vld [vmem:[%s3 + $0x8] sm:$0xff]
        %v611 = vld [vmem:[%s3 + $0x10] sm:$0xff]
        %v612 = vld [vmem:[%s3 + $0x18] sm:$0xff]
        %v613 = vld [vmem:[%s4] sm:$0xff]
        %v614 = vld [vmem:[%s4 + $0x8] sm:$0xff]
        %v615 = vld [vmem:[%s4 + $0x10] sm:$0xff]
        %v616 = vld [vmem:[%s4 + $0x18] sm:$0xff]
        %618 = vset.pattern.permute.xlu0 0
        %619 = vperm.xlu0 %618, %v613
        %v620 = vpop.permute.xlu0 %619
        %623 = vset.pattern.permute.xlu0 0
        %624 = vperm.xlu0 %623, %v614
        %v625 = vpop.permute.xlu0 %624
        %628 = vset.pattern.permute.xlu0 0
        %629 = vperm.xlu0 %628, %v615
        %v630 = vpop.permute.xlu0 %629
        %633 = vset.pattern.permute.xlu0 0
        %634 = vperm.xlu0 %633, %v616
        %v635 = vpop.permute.xlu0 %634
        %vm637 = vcmask 523264
        %v639 = vsel %vm637, %v609, 0
        %v642 = vsel %vm637, %v610, 0
        %v645 = vsel %vm637, %v611, 0
        %v648 = vsel %vm637, %v612, 0
        %650 = vmatpush.msra.mxu0 0.0
        %651 = vmatpush.msra.mxu0 0.0
        %652 = vmatpush.msra.mxu0 0.0
        %653 = vmatpush.msra.mxu0 0.0
        %654 = vmatpush.msra.mxu0 0.0
        %655 = vmatpush.msra.mxu0 0.0
        %656 = vmatpush.msra.mxu0 0.0
        %657 = vmatpush.msra.mxu0 0.0
        %658 = vmatpush.msra.mxu0 %v607
        %659 = vmatpush.msra.mxu0 %v605
        %660 = vmatpush.msra.mxu0 %v603
        %661 = vmatpush.msra.mxu0 %v601
        %662 = vmatpush.msra.mxu0 %v599
        %663 = vmatpush.msra.mxu0 %v597
        %664 = vmatpush.msra.mxu0 %v595
        %665 = vmatpush.msra.mxu0 %v593
        %666 = vmatmul.f32.gmra.mxu0 %v639
        %v667 = vpop.f32.mrf.mxu0
        %v668 = vadd.f32 %v620, %v667
        %669 = vmatmul.f32.gmra.mxu0 %v642
        %v670 = vpop.f32.mrf.mxu0
        %v671 = vadd.f32 %v625, %v670
        %672 = vmatmul.f32.gmra.mxu0 %v645
        %v673 = vpop.f32.mrf.mxu0
        %v674 = vadd.f32 %v630, %v673
        %675 = vmatmul.f32.gmra.mxu0 %v648
        %v676 = vpop.f32.mrf.mxu0
        %v677 = vadd.f32 %v635, %v676
        %678 = vdwg.mxu0
        %679 = vmatpush.msra.mxu0 0.0
        %680 = vmatpush.msra.mxu0 0.0
        %681 = vmatpush.msra.mxu0 0.0
        %682 = vmatpush.msra.mxu0 0.0
        %683 = vmatpush.msra.mxu0 0.0
        %684 = vmatpush.msra.mxu0 0.0
        %685 = vmatpush.msra.mxu0 0.0
        %686 = vmatpush.msra.mxu0 0.0
        %687 = vmatpush.msra.mxu0 %v608
        %688 = vmatpush.msra.mxu0 %v606
        %689 = vmatpush.msra.mxu0 %v604
        %690 = vmatpush.msra.mxu0 %v602
        %691 = vmatpush.msra.mxu0 %v600
        %692 = vmatpush.msra.mxu0 %v598
        %693 = vmatpush.msra.mxu0 %v596
        %694 = vmatpush.msra.mxu0 %v594
        %695 = vmatmul.f32.gmra.mxu0 %v639
        %v696 = vpop.f32.mrf.mxu0
        %v697 = vadd.f32 %v620, %v696
        %698 = vmatmul.f32.gmra.mxu0 %v642
        %v699 = vpop.f32.mrf.mxu0
        %v700 = vadd.f32 %v625, %v699
        %701 = vmatmul.f32.gmra.mxu0 %v645
        %v702 = vpop.f32.mrf.mxu0
        %v703 = vadd.f32 %v630, %v702
        %704 = vmatmul.f32.gmra.mxu0 %v648
        %v705 = vpop.f32.mrf.mxu0
        %v706 = vadd.f32 %v635, %v705
        %707 = vdwg.mxu0
        %v708 = vmax.f32 %v668, 0.0
        %v709 = vmax.f32 %v697, 0.0
        %v710 = vmax.f32 %v671, 0.0
        %v711 = vmax.f32 %v700, 0.0
        %v712 = vmax.f32 %v674, 0.0
        %v713 = vmax.f32 %v703, 0.0
        %v714 = vmax.f32 %v677, 0.0
        %v715 = vmax.f32 %v706, 0.0
        %v716 = vld [vmem:[%s5] sm:$0xff]
        %v717 = vld [vmem:[%s5 + $0x8] sm:$0xff]
        %v718 = vld [vmem:[%s5 + $0x10] sm:$0xff]
        %v719 = vld [vmem:[%s5 + $0x18] sm:$0xff]
        %v720 = vld [vmem:[#allocation2] sm:$0x1]
        %722 = vset.pattern.permute.xlu0 0
        %723 = vperm.xlu0 %722, %v716
        %v724 = vpop.permute.xlu0 %723
        %727 = vset.pattern.permute.xlu0 0
        %728 = vperm.xlu0 %727, %v717
        %v729 = vpop.permute.xlu0 %728
        %732 = vset.pattern.permute.xlu0 0
        %733 = vperm.xlu0 %732, %v718
        %v734 = vpop.permute.xlu0 %733
        %737 = vset.pattern.permute.xlu0 0
        %738 = vperm.xlu0 %737, %v719
        %v739 = vpop.permute.xlu0 %738
        %v741 = vmul.f32 %v708, %v724
        %v742 = vmul.f32 %v709, %v724
        %v743 = vmul.f32 %v710, %v729
        %v744 = vmul.f32 %v711, %v729
        %v745 = vmul.f32 %v712, %v734
        %v746 = vmul.f32 %v713, %v734
        %v747 = vmul.f32 %v714, %v739
        %v748 = vmul.f32 %v715, %v739
        %v749 = vadd.f32 %v741, %v743
        %v750 = vadd.f32 %v749, %v745
        %v751 = vadd.f32 %v750, %v747
        %v752 = vrot.slane %v751, 4
        %v753 = vadd.f32 %v751, %v752
        %v754 = vrot.slane %v753, 2
        %v755 = vadd.f32 %v753, %v754
        %v756 = vrot.slane %v755, 1
        %v757 = vadd.f32 %v755, %v756
        %v758 = vadd.f32 %v742, %v744
        %v759 = vadd.f32 %v758, %v746
        %v760 = vadd.f32 %v759, %v748
        %v761 = vrot.slane %v760, 4
        %v762 = vadd.f32 %v760, %v761
        %v763 = vrot.slane %v762, 2
        %v764 = vadd.f32 %v762, %v763
        %v765 = vrot.slane %v764, 1
        %v766 = vadd.f32 %v764, %v765
        %768 = vset.pattern.permute.xlu0 0
        %769 = vperm.xlu0 %768, %v720
        %v770 = vpop.permute.xlu0 %769
        %v772 = vperm.slane %v770, 0
        %v773 = vadd.f32 %v757, %v772
        %v774 = vadd.f32 %v766, %v772
        %v775 = vmul.f32 %v773, 0.5
        %v776 = vmul.f32 %v774, 0.5
        %v777 = vtanh.pop %v775
        %v778 = vtanh.pop %v776
        %v779 = vadd.f32 %v777, 1.0
        %v780 = vadd.f32 %v778, 1.0
        %v781 = vmul.f32 %v779, 0.5
        %v782 = vmul.f32 %v780, 0.5
        %v785 = vrot.slane %v782, 7
        %vm786 = vcmask 1040384
        %v787 = vsel %vm786, %v781, %v785
        %v789 = vlaneseq
        %vm790 = vcmp.ge.s32.totalorder %v789, 0
        %vm791 = vcmp.lt.s32.totalorder %v789, 256
        %vm792 = vmand %vm790, %vm791
        %793 = vst.msk [vmem:[%s286] sm:$0x3] %vm792, %v787
        %s794 = sand.u32 %s183, 1
        %s795 = scalar_lea.sflag [#allocation4], %s794
        %s796 = sand.u32 %s183, 1
        %s797 = smul.addr %s796, 2
        %s798 = scalar_lea.vmem [#allocation3], %s797
        // Predicated region
        $region49: #{tpu_custom_call.1} parent=47 // pred_check
          %p799 = pneg %p193
        $region50: #{tpu_custom_call.1} parent=47 // pred_check_branch
          %801 = sbr.rel (%p799) target = $region52
        $region51: #{tpu_custom_call.1} parent=47 // pred_region
          %s802 = smul.u32 2, %s23
          %804 = vsyncadd %s795, 0
          %s805 = scalar_lea.hbm %s7, %s802
          %s807 = sshll.u32 %s798, 4
          %s808 = int_to_ptr.vmem [resolvable:$true] %s807
          %s809 = sshll.u32 %s805, 4
          %s810 = int_to_ptr.hbm [resolvable:$true] %s809
          %812 = dma.vmem_to_hbm [thread:$0]  %s808, 32, %s810, %s795
        $region52: #{tpu_custom_call.1} parent=47 // pred_fallthru
          _
      $region48: #{tpu_custom_call.1} parent=5 // pred_fallthru
        _
      %p813 = scmp.le.s32.totalorder 2, %s18
      // Predicated region
      $region53: #{tpu_custom_call.1} parent=5 // pred_check
        %p814 = pneg %p813
      $region54: #{tpu_custom_call.1} parent=5 // pred_check_branch
        %816 = sbr.rel (%p814) target = $region56
      $region55: #{tpu_custom_call.1} parent=5 // pred_region
        %s817 = ssub.s32 %s18, 2
        // Predicated region
        $region57: #{tpu_custom_call.1} parent=55 // pred_check
          %p818 = pneg %p199
        $region58: #{tpu_custom_call.1} parent=55 // pred_check_branch
          %820 = sbr.rel (%p818) target = $region60
        $region59: #{tpu_custom_call.1} parent=55 // pred_region
          %s821 = sand.u32 %s184, 1
          %s822 = scalar_lea.sflag [#allocation4], %s821
          %s823 = sand.u32 %s184, 1
          %s824 = smul.addr %s823, 2
          %s825 = scalar_lea.vmem [#allocation3], %s824
          %827 = dma.done %s822, 32
        $region60: #{tpu_custom_call.1} parent=55 // pred_fallthru
          _
      $region56: #{tpu_custom_call.1} parent=5 // pred_fallthru
        _
    $region6: #{tpu_custom_call.1} parent=1 // loop_footer
      %s22 = sadd.s32 1, %s18
    $region7: #{tpu_custom_call.1} parent=1 // loop_footer_branch
      %17 = sbr.rel target = $region3
    $region8: #{tpu_custom_call.1} parent=1 // loop_exit
      _
    %828 = vsyncpa [#allocation4], 1
    %s829 = scalar_lea.sflag [#allocation4], 1
    %830 = vsyncpa %s829, 1

</llo_original>
